<compile_context>
chip_gen: v5e
topology: v5e:2x2
jax: 0.10.0
libtpu: 0.0.40
codegen_flags: <defaults>
</compile_context>

<pallas_src>
import jax
import jax.numpy as jnp
from jax.experimental import pallas as pl
from jax.experimental.pallas import tpu as pltpu

EPS = 1e-5  # nn.LayerNorm default


def _ln_kernel_features_on_sublanes(x_ref, gamma_ref, beta_ref, o_ref):
    """x_ref: (F, tile_b) -- batch on lanes, features on sublanes (F < 128 path)."""
    x = x_ref[...].astype(jnp.float32)  # f32 math: no bf16 VPU/EUP on v5e
    inv_f = 1.0 / x.shape[0]            # static Python constant
    mean = jnp.sum(x, axis=0, keepdims=True) * inv_f
    d = x - mean
    var = jnp.sum(d * d, axis=0, keepdims=True) * inv_f  # two-pass, biased (÷N) like PyTorch
    inv = jax.lax.rsqrt(var + EPS)                        # EUP slot -> effectively free
    y = d * inv * gamma_ref[...] + beta_ref[...]          # gamma/beta: (F, 1), lane-broadcast
    o_ref[...] = y.astype(o_ref.dtype)


def _ln_kernel_features_on_lanes(x_ref, gamma_ref, beta_ref, o_ref):
    """x_ref: (tile_b, F) -- used when F >= 128 (lanes already dense)."""
    x = x_ref[...].astype(jnp.float32)
    inv_f = 1.0 / x.shape[-1]
    mean = jnp.sum(x, axis=-1, keepdims=True) * inv_f
    d = x - mean
    var = jnp.sum(d * d, axis=-1, keepdims=True) * inv_f
    inv = jax.lax.rsqrt(var + EPS)
    y = d * inv * gamma_ref[...] + beta_ref[...]          # gamma/beta: (1, F)
    o_ref[...] = y.astype(o_ref.dtype)


def _round_up(n: int, m: int) -> int:
    return ((n + m - 1) // m) * m


def _round_down(n: int, m: int) -> int:
    return max((n // m) * m, m)


def _batch_tile(b: int, bytes_per_row: int, align: int,
                target_bytes: int = 2 << 20, max_tile: int = 8192) -> int:
    """Tile along the batch axis: ~target_bytes of input per grid step, aligned
    to `align` (8 for sublanes / 128 for lanes), and capped so the grid has at
    least 2 steps when possible (keeps both v7x TensorCores busy)."""
    if b <= align:
        return b  # full extent -> always a legal block shape
    t = max(align, min(target_bytes // max(bytes_per_row, 1), max_tile, b))
    t = _round_down(t, align)
    t = min(t, _round_up(-(-b // 2), align))  # at least 2 grid steps
    return max(t, align)


def _vmem_limit(tile_bytes: int) -> int:
    # double-buffered input + output (~4x tile) + params + headroom;
    # clamp into [16 MiB, 48 MiB] -- safely under v7x's 64 MiB per-TC VMEM.
    need = 4 * tile_bytes + (2 << 20)
    return int(min(max(need, 16 << 20), 48 << 20))


def layer_norm_demo(x, gamma, beta):
    B, F = x.shape
    gamma = gamma.astype(jnp.float32)
    beta = beta.astype(jnp.float32)
    itemsize = jnp.dtype(x.dtype).itemsize

    def compiler(vmem_bytes):
        return pltpu.CompilerParams(
            dimension_semantics=("parallel",),  # megacore / v7x 2-TC sharding of the batch axis
            vmem_limit_bytes=vmem_bytes,
        )

    if F >= 128:
        # Features already fill the lanes: row-major blocks, reduce over lanes.
        tile_b = _batch_tile(B, F * itemsize, align=8)
        tile_bytes = tile_b * F * itemsize
        grid = (pl.cdiv(B, tile_b),)
        return pl.pallas_call(
            _ln_kernel_features_on_lanes,
            out_shape=jax.ShapeDtypeStruct((B, F), x.dtype),
            grid=grid,
            in_specs=[
                pl.BlockSpec((tile_b, F), lambda i: (i, 0)),
                pl.BlockSpec((1, F), lambda i: (0, 0)),   # resident across grid steps
                pl.BlockSpec((1, F), lambda i: (0, 0)),
            ],
            out_specs=pl.BlockSpec((tile_b, F), lambda i: (i, 0)),
            compiler_params=compiler(_vmem_limit(tile_bytes)),
        )(x, gamma.reshape(1, F), beta.reshape(1, F))

    # Tiny feature dim: put the batch on the 128 lanes, features on sublanes.
    xt = x.T  # (F, B) -- cheap layout plumbing outside the kernel
    tile_b = _batch_tile(B, _round_up(F, 8) * itemsize, align=128)
    tile_bytes = tile_b * _round_up(F, 8) * itemsize
    grid = (pl.cdiv(B, tile_b),)
    out_t = pl.pallas_call(
        _ln_kernel_features_on_sublanes,
        out_shape=jax.ShapeDtypeStruct((F, B), x.dtype),
        grid=grid,
        in_specs=[
            pl.BlockSpec((F, tile_b), lambda i: (0, i)),
            pl.BlockSpec((F, 1), lambda i: (0, 0)),       # resident across grid steps
            pl.BlockSpec((F, 1), lambda i: (0, 0)),
        ],
        out_specs=pl.BlockSpec((F, tile_b), lambda i: (0, i)),
        compiler_params=compiler(_vmem_limit(tile_bytes)),
    )(xt, gamma.reshape(F, 1), beta.reshape(F, 1))
    return out_t.T


if __name__ == "__main__":
    key = jax.random.PRNGKey(0)
    x = jax.random.normal(key, (2, 10), dtype=jnp.float32)

    # nn.LayerNorm(10) default init: weight=ones, bias=zeros (deterministic).
    gamma = jnp.ones((10,), dtype=jnp.float32)
    beta = jnp.zeros((10,), dtype=jnp.float32)

    # Mirror the module's debug print (torch .std() is the unbiased estimator).
    print("Before LN - mean:", float(jnp.mean(x)), "std:", float(jnp.std(x, ddof=1)))

    out = jax.block_until_ready(layer_norm_demo(x, gamma, beta))

    # TODO(synk): the PyTorch forward is truncated after `x = self.ln(x)` (stray `p`);
    # the LayerNorm output is returned as the forward result.

    # Sanity check against plain-JAX reference.
    mean = jnp.mean(x, axis=-1, keepdims=True)
    var = jnp.mean((x - mean) ** 2, axis=-1, keepdims=True)
    ref = (x - mean) / jnp.sqrt(var + EPS) * gamma + beta
    assert out.shape == x.shape and out.dtype == x.dtype
    assert jnp.allclose(out, ref, atol=1e-5, rtol=1e-5)

    print("KERNEL_OK")
</pallas_src>

<mosaic_0001>
module attributes {stable_mosaic.version = 11 : i64} {
  func.func @_ln_kernel_features_on_sublanes(%arg0: i32, %arg1: memref<10x2xf32, #tpu.memory_space<vmem>>, %arg2: memref<10x1xf32, #tpu.memory_space<vmem>>, %arg3: memref<10x1xf32, #tpu.memory_space<vmem>>, %arg4: memref<10x2xf32, #tpu.memory_space<vmem>>) attributes {dimension_semantics = [#tpu.dimension_semantics<parallel>], iteration_bounds = array<i64: 1>, scalar_prefetch = 0 : i64, scratch_operands = 0 : i64, tpu.core_type = #tpu.core_type<tc>, window_params = [{transform_indices = @transform_0, window_bounds = array<i64: 10, 2>}, {pipeline_mode = #tpu.pipeline_mode<synchronous>, transform_indices = @transform_1, window_bounds = array<i64: 10, 1>}, {pipeline_mode = #tpu.pipeline_mode<synchronous>, transform_indices = @transform_2, window_bounds = array<i64: 10, 1>}, {transform_indices = @transform_3, window_bounds = array<i64: 10, 2>}]} {
    %c0 = arith.constant 0 : index
    %c0_0 = arith.constant 0 : index
    %0 = vector.load %arg1[%c0, %c0_0] : memref<10x2xf32, #tpu.memory_space<vmem>>, vector<10x2xf32>
    %cst = arith.constant dense<0.000000e+00> : vector<2xf32>
    %1 = vector.multi_reduction <add>, %0, %cst [0] : vector<10x2xf32> to vector<2xf32>
    %2 = vector.shape_cast %1 : vector<2xf32> to vector<1x2xf32>
    %cst_1 = arith.constant 1.000000e-01 : f32
    %3 = vector.broadcast %cst_1 : f32 to vector<1x2xf32>
    %4 = arith.mulf %2, %3 : vector<1x2xf32>
    %5 = vector.broadcast %4 : vector<1x2xf32> to vector<10x2xf32>
    %6 = arith.subf %0, %5 : vector<10x2xf32>
    %7 = arith.mulf %6, %6 : vector<10x2xf32>
    %cst_2 = arith.constant dense<0.000000e+00> : vector<2xf32>
    %8 = vector.multi_reduction <add>, %7, %cst_2 [0] : vector<10x2xf32> to vector<2xf32>
    %9 = vector.shape_cast %8 : vector<2xf32> to vector<1x2xf32>
    %cst_3 = arith.constant 1.000000e-01 : f32
    %10 = vector.broadcast %cst_3 : f32 to vector<1x2xf32>
    %11 = arith.mulf %9, %10 : vector<1x2xf32>
    %cst_4 = arith.constant 9.99999974E-6 : f32
    %12 = vector.broadcast %cst_4 : f32 to vector<1x2xf32>
    %13 = arith.addf %11, %12 : vector<1x2xf32>
    %14 = math.rsqrt %13 : vector<1x2xf32>
    %15 = vector.broadcast %14 : vector<1x2xf32> to vector<10x2xf32>
    %16 = arith.mulf %6, %15 : vector<10x2xf32>
    %c0_5 = arith.constant 0 : index
    %c0_6 = arith.constant 0 : index
    %17 = vector.load %arg2[%c0_5, %c0_6] : memref<10x1xf32, #tpu.memory_space<vmem>>, vector<10x1xf32>
    %18 = vector.broadcast %17 : vector<10x1xf32> to vector<10x2xf32>
    %19 = arith.mulf %16, %18 : vector<10x2xf32>
    %c0_7 = arith.constant 0 : index
    %c0_8 = arith.constant 0 : index
    %20 = vector.load %arg3[%c0_7, %c0_8] : memref<10x1xf32, #tpu.memory_space<vmem>>, vector<10x1xf32>
    %21 = vector.broadcast %20 : vector<10x1xf32> to vector<10x2xf32>
    %22 = arith.addf %19, %21 : vector<10x2xf32>
    %c0_9 = arith.constant 0 : index
    %c0_10 = arith.constant 0 : index
    %23 = vector.load %arg4[%c0_9, %c0_10] : memref<10x2xf32, #tpu.memory_space<vmem>>, vector<10x2xf32>
    tpu.vector_store %arg4[%c0_9, %c0_10], %22 {strides = array<i32>} : memref<10x2xf32, #tpu.memory_space<vmem>>, vector<10x2xf32>,
    return
  }
  func.func @transform_0(%arg0: i32) -> (i32, i32) {
    %c0_i32 = arith.constant 0 : i32
    %c0_i32_0 = arith.constant 0 : i32
    return %c0_i32, %arg0 : i32, i32
  }
  func.func @transform_1(%arg0: i32) -> (i32, i32) {
    %c0_i32 = arith.constant 0 : i32
    %c0_i32_0 = arith.constant 0 : i32
    %c0_i32_1 = arith.constant 0 : i32
    return %c0_i32, %c0_i32_0 : i32, i32
  }
  func.func @transform_2(%arg0: i32) -> (i32, i32) {
    %c0_i32 = arith.constant 0 : i32
    %c0_i32_0 = arith.constant 0 : i32
    %c0_i32_1 = arith.constant 0 : i32
    return %c0_i32, %c0_i32_0 : i32, i32
  }
  func.func @transform_3(%arg0: i32) -> (i32, i32) {
    %c0_i32 = arith.constant 0 : i32
    %c0_i32_0 = arith.constant 0 : i32
    return %c0_i32, %arg0 : i32, i32
  }
}

</mosaic_0001>

<llo_original>
// kernel: tpu_custom_call.1
$region0: #{tpu_custom_call.1}
  #allocation0 [shape = 'u32[]', space=smem, size = 0x4, offset = 0x4, fixed_abs, tag = 'smem constant byte address 0x4 - core index']
  #allocation1 [shape = 'u32[72,128]{1,0:T(1,128)}', space=vmem, size = 0x9000, scoped, tag = 'internal scratch']
  %s0 = inlined_call_operand.vmem [shape: f32[10,2], index: 0, kind: input, shape index: {}]
  %s1 = inlined_call_operand.vmem [shape: f32[10,1], index: 1, kind: input, shape index: {}]
  %s2 = inlined_call_operand.vmem [shape: f32[10,1], index: 2, kind: input, shape index: {}]
  %s3 = inlined_call_operand.vmem [shape: f32[10,2], index: 3, kind: output, shape index: {}]
  %s4 = sld [smem:[#allocation0]]
  $region22: #{tpu_custom_call.1} parent=0
    _
  %s6 = ssub.s32 1, %s4
  %s7 = scalar_select 0, %s6, %s4
  // Predicated region
  $region2: #{tpu_custom_call.1} parent=0 // pred_check
    _
  $region3: #{tpu_custom_call.1} parent=0 // pred_check_branch
    %9 = sbr.rel (0) target = $region5
  $region4: #{tpu_custom_call.1} parent=0 // pred_region
    _
  $region5: #{tpu_custom_call.1} parent=0 // pred_fallthru
    _
  // Predicated region
  $region6: #{tpu_custom_call.1} parent=0 // pred_check
    _
  $region7: #{tpu_custom_call.1} parent=0 // pred_check_branch
    %11 = sbr.rel (0) target = $region9
  $region8: #{tpu_custom_call.1} parent=0 // pred_region
    _
  $region9: #{tpu_custom_call.1} parent=0 // pred_fallthru
    _
  // Predicated region
  $region10: #{tpu_custom_call.1} parent=0 // pred_check
    _
  $region11: #{tpu_custom_call.1} parent=0 // pred_check_branch
    %13 = sbr.rel (0) target = $region13
  $region12: #{tpu_custom_call.1} parent=0 // pred_region
    _
  $region13: #{tpu_custom_call.1} parent=0 // pred_fallthru
    _
  %v14 = vld [vmem:[%s0] sm:$0xff]
  %v15 = vld [vmem:[%s0 + $0x8] sm:$0x3]
  %vm16 = vcmask 15360
  %v17 = vsel %vm16, %v14, 0.0
  %vm18 = vcmask 9216
  %v19 = vsel %vm18, %v15, 0.0
  %v20 = vadd.f32 %v17, %v19
  %v21 = vrot.slane %v20, 4
  %v22 = vadd.f32 %v20, %v21
  %v23 = vrot.slane %v22, 2
  %v24 = vadd.f32 %v22, %v23
  %v25 = vrot.slane %v24, 1
  %v26 = vadd.f32 %v24, %v25
  %v27 = vmul.f32 %v26, 0.1
  %v28 = vsub.f32 %v14, %v27
  %v29 = vsub.f32 %v15, %v27
  %v30 = vmul.f32 %v28, %v28
  %v31 = vmul.f32 %v29, %v29
  %v32 = vsel %vm16, %v30, 0.0
  %v33 = vsel %vm18, %v31, 0.0
  %v34 = vadd.f32 %v32, %v33
  %v35 = vrot.slane %v34, 4
  %v36 = vadd.f32 %v34, %v35
  %v37 = vrot.slane %v36, 2
  %v38 = vadd.f32 %v36, %v37
  %v39 = vrot.slane %v38, 1
  %v40 = vadd.f32 %v38, %v39
  %v41 = vmul.f32 %v40, 0.1
  %v42 = vadd.f32 %v41, 1e-05
  %v43 = vrsqrt.pop %v42
  %v44 = vmul.f32 %v43, %v42
  %v45 = vmul.f32 %v44, %v43
  %v46 = vmul.f32 0.5, %v45
  %v47 = vsub.f32 1.5, %v46
  %v48 = vmul.f32 %v43, %v47
  %vm49 = vweird.f32 %v42
  %vm50 = vweird.f32 %v43
  %vm51 = vmor %vm49, %vm50
  %v52 = vsel %vm51, %v43, %v48
  %v53 = vmul.f32 %v28, %v52
  %v54 = vmul.f32 %v29, %v52
  %v55 = vld [vmem:[%s1] sm:$0xff]
  %v56 = vld [vmem:[%s1 + $0x8] sm:$0x3]
  %58 = vset.pattern.permute.xlu0 0
  %59 = vperm.xlu0 %58, %v55
  %v60 = vpop.permute.xlu0 %59
  %63 = vset.pattern.permute.xlu0 0
  %64 = vperm.xlu0 %63, %v56
  %v65 = vpop.permute.xlu0 %64
  %v67 = vmul.f32 %v53, %v60
  %v68 = vmul.f32 %v54, %v65
  %v69 = vld [vmem:[%s2] sm:$0xff]
  %v70 = vld [vmem:[%s2 + $0x8] sm:$0x3]
  %72 = vset.pattern.permute.xlu0 0
  %73 = vperm.xlu0 %72, %v69
  %v74 = vpop.permute.xlu0 %73
  %77 = vset.pattern.permute.xlu0 0
  %78 = vperm.xlu0 %77, %v70
  %v79 = vpop.permute.xlu0 %78
  %v81 = vadd.f32 %v67, %v74
  %v82 = vadd.f32 %v68, %v79
  %83 = vst.msk [vmem:[%s3] sm:$0xff] %vm16, %v81
  %84 = vst.msk [vmem:[%s3 + $0x8] sm:$0x3] %vm18, %v82
  // Predicated region
  $region14: #{tpu_custom_call.1} parent=0 // pred_check
    _
  $region15: #{tpu_custom_call.1} parent=0 // pred_check_branch
    %86 = sbr.rel (0) target = $region17
  $region16: #{tpu_custom_call.1} parent=0 // pred_region
    _
  $region17: #{tpu_custom_call.1} parent=0 // pred_fallthru
    _
  // Predicated region
  $region18: #{tpu_custom_call.1} parent=0 // pred_check
    _
  $region19: #{tpu_custom_call.1} parent=0 // pred_check_branch
    %88 = sbr.rel (0) target = $region21
  $region20: #{tpu_custom_call.1} parent=0 // pred_region
    _
  $region21: #{tpu_custom_call.1} parent=0 // pred_fallthru
    _

</llo_original>
